<compile_context>
chip_gen: v5e
topology: v5e:2x2
jax: 0.10.0
libtpu: 0.0.40
codegen_flags: <defaults>
</compile_context>

<pallas_src>
import math
import jax
import jax.numpy as jnp
from jax.experimental import pallas as pl
from jax.experimental.pallas import tpu as pltpu


def _round_up(x, m):
    return (x + m - 1) // m * m


def decomposed_linear_kernel(atten_ref, x_ref, swT_ref, awT_ref, mask_ref,
                             kb_ref, bias_ref, o_ref):
    # Weight composed directly in (IN, TO) orientation: feeds the MXU natively,
    # sigmoid(mask) broadcast is a cheap sublane broadcast, OUT is the lane dim.
    sig = jax.nn.sigmoid(mask_ref[...].astype(jnp.float32))                # (1, TO)
    w = swT_ref[...].astype(jnp.float32) * sig \
        + awT_ref[...].astype(jnp.float32)                                 # (IN, TO)
    # sum(atten * from_kb, dim=-1) == sum_k atten[k] * kb[k]; K is small -> static unroll.
    # TODO(synk): if K grows large, move the K reduction onto an "arbitrary" grid axis.
    for k in range(kb_ref.shape[0]):
        w = w + atten_ref[k] * kb_ref[k].astype(jnp.float32)               # SMEM scalar * (IN, TO)
    # F.linear: x @ weight.T == x @ w  (w already in (IN, OUT) orientation) -> MXU.
    out = jnp.dot(x_ref[...].astype(jnp.float32), w,
                  preferred_element_type=jnp.float32)                      # (B, TO)
    o_ref[...] = (out + bias_ref[...].astype(jnp.float32)).astype(o_ref.dtype)


def prepare_params(sw, aw, mask, bias, from_kb, *, param_dtype=jnp.float32,
                   block_out=None):
    """One-time layout prep (the 'set_knlwledge' moment): transpose to
    (IN, OUT) / (K, IN, OUT), pad OUT to a lane-dense multiple of the tile,
    and cast to the streaming dtype. NOT done per forward call."""
    OUT, IN = sw.shape
    if block_out is None:
        block_out = min(_round_up(OUT, 128), 256)
    out_pad = _round_up(OUT, block_out)
    pad = out_pad - OUT

    swT = jnp.pad(sw.T, ((0, 0), (0, pad))).astype(param_dtype)            # (IN, OUTp)
    awT = jnp.pad(aw.T, ((0, 0), (0, pad))).astype(param_dtype)            # (IN, OUTp)
    kbT = jnp.pad(jnp.transpose(from_kb, (2, 1, 0)),
                  ((0, 0), (0, 0), (0, pad))).astype(param_dtype)          # (K, IN, OUTp)
    mask2 = jnp.pad(mask.reshape(1, OUT), ((0, 0), (0, pad))).astype(param_dtype)
    bias2 = jnp.pad(bias.reshape(1, OUT), ((0, 0), (0, pad))).astype(param_dtype)
    return dict(swT=swT, awT=awT, kbT=kbT, mask=mask2, bias=bias2,
                out_features=OUT, block_out=block_out)


def decomposed_linear(x, atten, params):
    swT, awT, kbT = params["swT"], params["awT"], params["kbT"]
    mask2, bias2 = params["mask"], params["bias"]
    OUT, TO = params["out_features"], params["block_out"]
    IN, OUTp = swT.shape
    K = kbT.shape[0]

    B = x.shape[0]
    Bp = _round_up(B, 8)
    x_p = x.astype(jnp.float32)
    if Bp != B:
        x_p = jnp.pad(x_p, ((0, Bp - B), (0, 0)))

    dsize = jnp.dtype(swT.dtype).itemsize
    # VMEM budget: double-buffered weight/mask/bias/output tiles + resident x + headroom.
    tile_bytes = (2 * IN * TO + K * IN * TO + 2 * TO) * dsize + Bp * TO * 4
    vmem_limit = int(min(64 << 20,
                         max(32 << 20, 2 * tile_bytes + Bp * IN * 4 + (2 << 20))))

    cost = pl.CostEstimate(
        flops=2 * Bp * IN * OUTp + 3 * (K + 2) * IN * OUTp,
        transcendentals=OUTp,
        bytes_accessed=(K + 2) * IN * OUTp * dsize + (Bp * IN + Bp * OUTp) * 4,
    )

    out_p = pl.pallas_call(
        decomposed_linear_kernel,
        out_shape=jax.ShapeDtypeStruct((Bp, OUTp), jnp.float32),
        grid_spec=pltpu.PrefetchScalarGridSpec(
            num_scalar_prefetch=1,                                      # atten -> SMEM
            grid=(OUTp // TO,),
            in_specs=[
                pl.BlockSpec((Bp, IN), lambda o, atten: (0, 0)),        # x (resident)
                pl.BlockSpec((IN, TO), lambda o, atten: (0, o)),        # sw^T tile
                pl.BlockSpec((IN, TO), lambda o, atten: (0, o)),        # aw^T tile
                pl.BlockSpec((1, TO), lambda o, atten: (0, o)),         # mask tile
                pl.BlockSpec((K, IN, TO), lambda o, atten: (0, 0, o)),  # from_kb tile
                pl.BlockSpec((1, TO), lambda o, atten: (0, o)),         # bias tile
            ],
            out_specs=pl.BlockSpec((Bp, TO), lambda o, atten: (0, o)),
        ),
        compiler_params=pltpu.CompilerParams(
            dimension_semantics=("parallel",),          # shard OUT tiles across TCs (v7x)
            vmem_limit_bytes=vmem_limit,
        ),
        cost_estimate=cost,
    )(atten.astype(jnp.float32), x_p, swT, awT, mask2, kbT, bias2)

    return out_p[:B, :OUT]


def reference(x, sw, aw, mask, bias, atten, from_kb):
    weight = sw * jax.nn.sigmoid(mask)[:, None] + aw + jnp.sum(atten * from_kb, axis=-1)
    return x @ weight.T + bias


if __name__ == "__main__":
    # Small shapes consistent with the module's forward.
    B, IN, OUT, K = 8, 32, 64, 4

    key = jax.random.PRNGKey(0)
    k_sw, k_aw, k_mask, k_bias, k_atten, k_kb, k_x = jax.random.split(key, 7)

    # Deterministic init mimicking kaiming_uniform_(a=sqrt(5)) bounds: 1/sqrt(fan_in).
    bound = 1.0 / math.sqrt(IN)
    sw = jax.random.uniform(k_sw, (OUT, IN), jnp.float32, -bound, bound)
    aw = jax.random.uniform(k_aw, (OUT, IN), jnp.float32, -bound, bound)
    mask = jax.random.uniform(k_mask, (OUT,), jnp.float32, -bound, bound)
    bias = jax.random.uniform(k_bias, (OUT,), jnp.float32, -bound, bound)
    # set_atten(t != 0, dim=K) -> uniform [0, 1); set_knlwledge(from_kb)
    atten = jax.random.uniform(k_atten, (K,), jnp.float32)
    from_kb = jax.random.uniform(k_kb, (OUT, IN, K), jnp.float32)
    x = jax.random.normal(k_x, (B, IN), jnp.float32)

    ref = reference(x, sw, aw, mask, bias, atten, from_kb)

    # f32 parameter streaming (tight tolerance).
    params_f32 = prepare_params(sw, aw, mask, bias, from_kb, param_dtype=jnp.float32)
    out = jax.block_until_ready(decomposed_linear(x, atten, params_f32))
    assert out.shape == (B, OUT)
    assert jnp.allclose(out, ref, atol=1e-4, rtol=1e-4), "f32 mismatch vs reference"

    # bf16 parameter streaming (halves HBM bytes of the dominant from_kb stream);
    # composition and matmul accumulation remain f32 inside the kernel.
    params_bf16 = prepare_params(sw, aw, mask, bias, from_kb, param_dtype=jnp.bfloat16)
    out_bf = jax.block_until_ready(decomposed_linear(x, atten, params_bf16))
    assert out_bf.shape == (B, OUT)
    assert jnp.allclose(out_bf, ref, atol=2e-1, rtol=5e-2), "bf16 mismatch vs reference"

    print("KERNEL_OK")
</pallas_src>

<mosaic_0001>
module attributes {stable_mosaic.version = 11 : i64} {
  func.func @decomposed_linear_kernel(%arg0: i32, %arg1: memref<4xf32, #tpu.memory_space<smem>>, %arg2: memref<8x32xf32, #tpu.memory_space<vmem>>, %arg3: memref<32x128xf32, #tpu.memory_space<vmem>>, %arg4: memref<32x128xf32, #tpu.memory_space<vmem>>, %arg5: memref<1x128xf32, #tpu.memory_space<vmem>>, %arg6: memref<4x32x128xf32, #tpu.memory_space<vmem>>, %arg7: memref<1x128xf32, #tpu.memory_space<vmem>>, %arg8: memref<8x128xf32, #tpu.memory_space<vmem>>) attributes {dimension_semantics = [#tpu.dimension_semantics<parallel>], iteration_bounds = array<i64: 1>, scalar_prefetch = 1 : i64, scratch_operands = 0 : i64, tpu.core_type = #tpu.core_type<tc>, window_params = [{pipeline_mode = #tpu.pipeline_mode<synchronous>, transform_indices = @transform_0, window_bounds = array<i64: 8, 32>}, {transform_indices = @transform_1, window_bounds = array<i64: 32, 128>}, {transform_indices = @transform_2, window_bounds = array<i64: 32, 128>}, {transform_indices = @transform_3, window_bounds = array<i64: 1, 128>}, {transform_indices = @transform_4, window_bounds = array<i64: 4, 32, 128>}, {transform_indices = @transform_5, window_bounds = array<i64: 1, 128>}, {transform_indices = @transform_6, window_bounds = array<i64: 8, 128>}]} {
    %c0 = arith.constant 0 : index
    %c0_0 = arith.constant 0 : index
    %0 = vector.load %arg5[%c0, %c0_0] : memref<1x128xf32, #tpu.memory_space<vmem>>, vector<1x128xf32>
    %1 = arith.negf %0 : vector<1x128xf32>
    %2 = math.exp %1 : vector<1x128xf32>
    %cst = arith.constant 1.000000e+00 : f32
    %3 = vector.broadcast %cst : f32 to vector<1x128xf32>
    %4 = arith.addf %3, %2 : vector<1x128xf32>
    %5 = arith.divf %3, %4 : vector<1x128xf32>
    %c0_1 = arith.constant 0 : index
    %c0_2 = arith.constant 0 : index
    %6 = vector.load %arg3[%c0_1, %c0_2] : memref<32x128xf32, #tpu.memory_space<vmem>>, vector<32x128xf32>
    %7 = vector.broadcast %5 : vector<1x128xf32> to vector<32x128xf32>
    %8 = arith.mulf %6, %7 : vector<32x128xf32>
    %c0_3 = arith.constant 0 : index
    %c0_4 = arith.constant 0 : index
    %9 = vector.load %arg4[%c0_3, %c0_4] : memref<32x128xf32, #tpu.memory_space<vmem>>, vector<32x128xf32>
    %10 = arith.addf %8, %9 : vector<32x128xf32>
    %c0_5 = arith.constant 0 : index
    %11 = memref.load %arg1[%c0_5] : memref<4xf32, #tpu.memory_space<smem>>
    %c0_6 = arith.constant 0 : index
    %c0_7 = arith.constant 0 : index
    %c0_8 = arith.constant 0 : index
    %12 = vector.load %arg6[%c0_6, %c0_7, %c0_8] : memref<4x32x128xf32, #tpu.memory_space<vmem>>, vector<1x32x128xf32>
    %13 = vector.shape_cast %12 : vector<1x32x128xf32> to vector<32x128xf32>
    %14 = vector.broadcast %11 : f32 to vector<32x128xf32>
    %15 = arith.mulf %14, %13 : vector<32x128xf32>
    %16 = arith.addf %10, %15 : vector<32x128xf32>
    %c1 = arith.constant 1 : index
    %17 = memref.load %arg1[%c1] : memref<4xf32, #tpu.memory_space<smem>>
    %c1_9 = arith.constant 1 : index
    %c0_10 = arith.constant 0 : index
    %c0_11 = arith.constant 0 : index
    %18 = vector.load %arg6[%c1_9, %c0_10, %c0_11] : memref<4x32x128xf32, #tpu.memory_space<vmem>>, vector<1x32x128xf32>
    %19 = vector.shape_cast %18 : vector<1x32x128xf32> to vector<32x128xf32>
    %20 = vector.broadcast %17 : f32 to vector<32x128xf32>
    %21 = arith.mulf %20, %19 : vector<32x128xf32>
    %22 = arith.addf %16, %21 : vector<32x128xf32>
    %c2 = arith.constant 2 : index
    %23 = memref.load %arg1[%c2] : memref<4xf32, #tpu.memory_space<smem>>
    %c2_12 = arith.constant 2 : index
    %c0_13 = arith.constant 0 : index
    %c0_14 = arith.constant 0 : index
    %24 = vector.load %arg6[%c2_12, %c0_13, %c0_14] : memref<4x32x128xf32, #tpu.memory_space<vmem>>, vector<1x32x128xf32>
    %25 = vector.shape_cast %24 : vector<1x32x128xf32> to vector<32x128xf32>
    %26 = vector.broadcast %23 : f32 to vector<32x128xf32>
    %27 = arith.mulf %26, %25 : vector<32x128xf32>
    %28 = arith.addf %22, %27 : vector<32x128xf32>
    %c3 = arith.constant 3 : index
    %29 = memref.load %arg1[%c3] : memref<4xf32, #tpu.memory_space<smem>>
    %c3_15 = arith.constant 3 : index
    %c0_16 = arith.constant 0 : index
    %c0_17 = arith.constant 0 : index
    %30 = vector.load %arg6[%c3_15, %c0_16, %c0_17] : memref<4x32x128xf32, #tpu.memory_space<vmem>>, vector<1x32x128xf32>
    %31 = vector.shape_cast %30 : vector<1x32x128xf32> to vector<32x128xf32>
    %32 = vector.broadcast %29 : f32 to vector<32x128xf32>
    %33 = arith.mulf %32, %31 : vector<32x128xf32>
    %34 = arith.addf %28, %33 : vector<32x128xf32>
    %c0_18 = arith.constant 0 : index
    %c0_19 = arith.constant 0 : index
    %35 = vector.load %arg2[%c0_18, %c0_19] : memref<8x32xf32, #tpu.memory_space<vmem>>, vector<8x32xf32>
    %cst_20 = arith.constant dense<0.000000e+00> : vector<8x128xf32>
    %36 = tpu.matmul %35, %34, %cst_20 {dimension_numbers = #tpu.dot_dimension_numbers<[1], [0], [0], [1], [0, 0, 1, 1], [], []>} : vector<8x32xf32>, vector<32x128xf32>, vector<8x128xf32> -> vector<8x128xf32>
    %c0_21 = arith.constant 0 : index
    %c0_22 = arith.constant 0 : index
    %37 = vector.load %arg7[%c0_21, %c0_22] : memref<1x128xf32, #tpu.memory_space<vmem>>, vector<1x128xf32>
    %38 = vector.broadcast %37 : vector<1x128xf32> to vector<8x128xf32>
    %39 = arith.addf %36, %38 : vector<8x128xf32>
    %c0_23 = arith.constant 0 : index
    %c0_24 = arith.constant 0 : index
    %40 = vector.load %arg8[%c0_23, %c0_24] : memref<8x128xf32, #tpu.memory_space<vmem>>, vector<8x128xf32>
    tpu.vector_store %arg8[%c0_23, %c0_24], %39 {strides = array<i32>} : memref<8x128xf32, #tpu.memory_space<vmem>>, vector<8x128xf32>,
    return
  }
  func.func @transform_0(%arg0: i32, %arg1: memref<4xf32, #tpu.memory_space<smem>>) -> (i32, i32) {
    %c0_i32 = arith.constant 0 : i32
    %c0_i32_0 = arith.constant 0 : i32
    %c0_i32_1 = arith.constant 0 : i32
    return %c0_i32, %c0_i32_0 : i32, i32
  }
  func.func @transform_1(%arg0: i32, %arg1: memref<4xf32, #tpu.memory_space<smem>>) -> (i32, i32) {
    %c0_i32 = arith.constant 0 : i32
    %c0_i32_0 = arith.constant 0 : i32
    return %c0_i32, %arg0 : i32, i32
  }
  func.func @transform_2(%arg0: i32, %arg1: memref<4xf32, #tpu.memory_space<smem>>) -> (i32, i32) {
    %c0_i32 = arith.constant 0 : i32
    %c0_i32_0 = arith.constant 0 : i32
    return %c0_i32, %arg0 : i32, i32
  }
  func.func @transform_3(%arg0: i32, %arg1: memref<4xf32, #tpu.memory_space<smem>>) -> (i32, i32) {
    %c0_i32 = arith.constant 0 : i32
    %c0_i32_0 = arith.constant 0 : i32
    return %c0_i32, %arg0 : i32, i32
  }
  func.func @transform_4(%arg0: i32, %arg1: memref<4xf32, #tpu.memory_space<smem>>) -> (i32, i32, i32) {
    %c0_i32 = arith.constant 0 : i32
    %c0_i32_0 = arith.constant 0 : i32
    %c0_i32_1 = arith.constant 0 : i32
    return %c0_i32, %c0_i32_0, %arg0 : i32, i32, i32
  }
  func.func @transform_5(%arg0: i32, %arg1: memref<4xf32, #tpu.memory_space<smem>>) -> (i32, i32) {
    %c0_i32 = arith.constant 0 : i32
    %c0_i32_0 = arith.constant 0 : i32
    return %c0_i32, %arg0 : i32, i32
  }
  func.func @transform_6(%arg0: i32, %arg1: memref<4xf32, #tpu.memory_space<smem>>) -> (i32, i32) {
    %c0_i32 = arith.constant 0 : i32
    %c0_i32_0 = arith.constant 0 : i32
    return %c0_i32, %arg0 : i32, i32
  }
}

</mosaic_0001>

<llo_original>
// kernel: tpu_custom_call.1
$region0: #{tpu_custom_call.1}
  #allocation0 [shape = 'u32[]', space=smem, size = 0x4, offset = 0x4, fixed_abs, tag = 'smem constant byte address 0x4 - core index']
  #allocation1 [shape = 'u32[72,128]{1,0:T(1,128)}', space=vmem, size = 0x9000, scoped, tag = 'internal scratch']
  #allocation2 [shape = 's32[1]{0}', space=sflag, size = 0x4, scoped, tag = 'scoped memory for tpu_custom_call.1']
  #allocation3 [shape = 'u8[512]{0}', space=smem, size = 0x200, scoped, tag = 'prefetched SMEM operand 0']
  %s0 = inlined_call_operand.hbm [shape: f32[4], index: 0, kind: input, shape index: {}]
  %s1 = inlined_call_operand.hbm [shape: f32[8,32], index: 1, kind: input, shape index: {}]
  %s2 = inlined_call_operand.hbm [shape: f32[32,128], index: 2, kind: input, shape index: {}]
  %s3 = inlined_call_operand.hbm [shape: f32[32,128], index: 3, kind: input, shape index: {}]
  %s4 = inlined_call_operand.vmem [shape: f32[1,128], index: 4, kind: input, shape index: {}]
  %s5 = inlined_call_operand.hbm [shape: f32[4,32,128], index: 5, kind: input, shape index: {}]
  %s6 = inlined_call_operand.vmem [shape: f32[1,128], index: 6, kind: input, shape index: {}]
  %s7 = inlined_call_operand.hbm [shape: f32[8,128], index: 7, kind: output, shape index: {}]
  %s8 = sld [smem:[#allocation0]]
  $region50: #{tpu_custom_call.1} parent=0
    _
  %s10 = ssub.s32 1, %s8
  %s11 = scalar_select 0, %s10, %s8
  %s13 = sshll.u32 %s0, 4
  %s14 = int_to_ptr.hbm [resolvable:$true] %s13
  %16 = dma.hbm_to_smem %s14, 16, [#allocation3], [#allocation2]
  %18 = dma.done [#allocation2], 16
  %19 = sfence
  $region1: #{tpu_custom_call.1} parent=0
    #allocation4 [shape = 'u8[4096]{0}', space=vmem, size = 0x1000, scoped, tag = 'input window, operand 1, single buffered']
    #allocation5 [shape = 's32[1]{0}', space=sflag, size = 0x4, scoped, tag = 'scoped memory for tpu_custom_call.1']
    #allocation6 [shape = 's32[1]{0}', space=sflag, size = 0x4, scoped, tag = 'scoped memory for tpu_custom_call.1']
    #allocation7 [shape = 'u8[16384]{0}', space=vmem, size = 0x4000, scoped, tag = 'input window, operand 2, single buffered']
    #allocation8 [shape = 's32[1]{0}', space=sflag, size = 0x4, scoped, tag = 'scoped memory for tpu_custom_call.1']
    #allocation9 [shape = 'u8[16384]{0}', space=vmem, size = 0x4000, scoped, tag = 'input window, operand 3, single buffered']
    #allocation10 [shape = 'u8[65536]{0}', space=vmem, size = 0x10000, scoped, tag = 'input window, operand 5, single buffered']
    #allocation11 [shape = 's32[1]{0}', space=sflag, size = 0x4, scoped, tag = 'scoped memory for tpu_custom_call.1']
    #allocation12 [shape = 'u8[4096]{0}', space=vmem, size = 0x1000, scoped, tag = 'output window, operand 0, single buffered']
    %20 = vsyncpa [#allocation5], 0
    %21 = vsyncpa [#allocation8], 0
    %22 = vsyncpa [#allocation11], 0
    %23 = vsyncpa [#allocation6], 0
    // Predicated region
    $region2: #{tpu_custom_call.1} parent=1 // pred_check
      _
    $region3: #{tpu_custom_call.1} parent=1 // pred_check_branch
      %25 = sbr.rel (0) target = $region5
    $region4: #{tpu_custom_call.1} parent=1 // pred_region
      %27 = vsyncadd [#allocation5], 0
      %s29 = sshll.u32 %s1, 4
      %s30 = int_to_ptr.hbm [resolvable:$true] %s29
      %s31 = sshll.u32 [#allocation4], 4
      %s32 = int_to_ptr.vmem [resolvable:$true] %s31
      %34 = dma.hbm_to_vmem [thread:$0]  %s30, 128, %s32, [#allocation5]
    $region5: #{tpu_custom_call.1} parent=1 // pred_fallthru
      _
    // Predicated region
    $region6: #{tpu_custom_call.1} parent=1 // pred_check
      _
    $region7: #{tpu_custom_call.1} parent=1 // pred_check_branch
      %36 = sbr.rel (0) target = $region9
    $region8: #{tpu_custom_call.1} parent=1 // pred_region
      %38 = vsyncadd [#allocation8], 0
      %s39 = sshll.u32 %s2, 4
      %s40 = int_to_ptr.hbm [resolvable:$true] %s39
      %s41 = sshll.u32 [#allocation7], 4
      %s42 = int_to_ptr.vmem [resolvable:$true] %s41
      %47 = dma.hbm_to_vmem [thread:$0]  %s40, 512, %s42, [#allocation8], 128, 128, 8
    $region9: #{tpu_custom_call.1} parent=1 // pred_fallthru
      _
    // Predicated region
    $region10: #{tpu_custom_call.1} parent=1 // pred_check
      _
    $region11: #{tpu_custom_call.1} parent=1 // pred_check_branch
      %49 = sbr.rel (0) target = $region13
    $region12: #{tpu_custom_call.1} parent=1 // pred_region
      %51 = vsyncadd [#allocation8], 0
      %s52 = sshll.u32 %s3, 4
      %s53 = int_to_ptr.hbm [resolvable:$true] %s52
      %s54 = sshll.u32 [#allocation9], 4
      %s55 = int_to_ptr.vmem [resolvable:$true] %s54
      %60 = dma.hbm_to_vmem [thread:$0]  %s53, 512, %s55, [#allocation8], 128, 128, 8
    $region13: #{tpu_custom_call.1} parent=1 // pred_fallthru
      _
    // Predicated region
    $region14: #{tpu_custom_call.1} parent=1 // pred_check
      _
    $region15: #{tpu_custom_call.1} parent=1 // pred_check_branch
      %62 = sbr.rel (0) target = $region17
    $region16: #{tpu_custom_call.1} parent=1 // pred_region
      _
    $region17: #{tpu_custom_call.1} parent=1 // pred_fallthru
      _
    // Predicated region
    $region18: #{tpu_custom_call.1} parent=1 // pred_check
      _
    $region19: #{tpu_custom_call.1} parent=1 // pred_check_branch
      %64 = sbr.rel (0) target = $region21
    $region20: #{tpu_custom_call.1} parent=1 // pred_region
      %66 = vsyncadd [#allocation11], 0
      %s67 = sshll.u32 %s5, 4
      %s68 = int_to_ptr.hbm [resolvable:$true] %s67
      %s69 = sshll.u32 [#allocation10], 4
      %s70 = int_to_ptr.vmem [resolvable:$true] %s69
      %75 = dma.hbm_to_vmem [thread:$0]  %s68, 2048, %s70, [#allocation11], 128, 128, 8
    $region21: #{tpu_custom_call.1} parent=1 // pred_fallthru
      _
    // Predicated region
    $region22: #{tpu_custom_call.1} parent=1 // pred_check
      _
    $region23: #{tpu_custom_call.1} parent=1 // pred_check_branch
      %77 = sbr.rel (0) target = $region25
    $region24: #{tpu_custom_call.1} parent=1 // pred_region
      _
    $region25: #{tpu_custom_call.1} parent=1 // pred_fallthru
      _
    // Predicated region
    $region26: #{tpu_custom_call.1} parent=1 // pred_check
      _
    $region27: #{tpu_custom_call.1} parent=1 // pred_check_branch
      %79 = sbr.rel (0) target = $region29
    $region28: #{tpu_custom_call.1} parent=1 // pred_region
      %81 = dma.done [#allocation5], 128
    $region29: #{tpu_custom_call.1} parent=1 // pred_fallthru
      _
    // Predicated region
    $region30: #{tpu_custom_call.1} parent=1 // pred_check
      _
    $region31: #{tpu_custom_call.1} parent=1 // pred_check_branch
      %83 = sbr.rel (0) target = $region33
    $region32: #{tpu_custom_call.1} parent=1 // pred_region
      %85 = dma.done [#allocation8], 512
    $region33: #{tpu_custom_call.1} parent=1 // pred_fallthru
      _
    // Predicated region
    $region34: #{tpu_custom_call.1} parent=1 // pred_check
      _
    $region35: #{tpu_custom_call.1} parent=1 // pred_check_branch
      %87 = sbr.rel (0) target = $region37
    $region36: #{tpu_custom_call.1} parent=1 // pred_region
      %89 = dma.done [#allocation8], 512
    $region37: #{tpu_custom_call.1} parent=1 // pred_fallthru
      _
    // Predicated region
    $region38: #{tpu_custom_call.1} parent=1 // pred_check
      _
    $region39: #{tpu_custom_call.1} parent=1 // pred_check_branch
      %91 = sbr.rel (0) target = $region41
    $region40: #{tpu_custom_call.1} parent=1 // pred_region
      %93 = dma.done [#allocation11], 2048
    $region41: #{tpu_custom_call.1} parent=1 // pred_fallthru
      _
    %v94 = vld [vmem:[%s4] sm:$0x1]
    %v95 = vxor.u32 %v94, 2147483648
    %v96 = vmul.f32 %v95, 1.442695
    %v97 = vpow.pop %v96
    %v98 = vadd.f32 %v97, 1.0
    %v99 = vrcp.pop %v98
    %v100 = vmul.f32 %v98, %v99
    %v101 = vsub.f32 1.0, %v100
    %v102 = vmul.f32 %v99, %v101
    %v103 = vadd.f32 %v99, %v102
    %vm104 = vweird.f32 %v98
    %vm105 = vweird.f32 %v99
    %vm106 = vmor %vm104, %vm105
    %v107 = vsel %vm106, %v99, %v103
    %v108 = vand.u32 2147483647, %v98
    %vm109 = vcmp.eq.f32.partialorder %v108, 8.507059e+37
    %v110 = vand.u32 %v98, 2147483648
    %v111 = vor.u32 1.1754944e-38, %v110
    %v112 = vsel %vm109, %v111, %v107
    %v113 = vmul.f32 1.0, %v112
    %v114 = vld [vmem:[#allocation7] sm:$0xff]
    %v115 = vld [vmem:[#allocation7 + $0x8] sm:$0xff]
    %v116 = vld [vmem:[#allocation7 + $0x10] sm:$0xff]
    %v117 = vld [vmem:[#allocation7 + $0x18] sm:$0xff]
    %v119 = vperm.slane %v113, 0
    %v121 = vmul.f32 %v114, %v119
    %v122 = vmul.f32 %v115, %v119
    %v123 = vmul.f32 %v116, %v119
    %v124 = vmul.f32 %v117, %v119
    %v125 = vld [vmem:[#allocation9] sm:$0xff]
    %v126 = vld [vmem:[#allocation9 + $0x8] sm:$0xff]
    %v127 = vld [vmem:[#allocation9 + $0x10] sm:$0xff]
    %v128 = vld [vmem:[#allocation9 + $0x18] sm:$0xff]
    %v129 = vadd.f32 %v121, %v125
    %v130 = vadd.f32 %v122, %v126
    %v131 = vadd.f32 %v123, %v127
    %v132 = vadd.f32 %v124, %v128
    %s133 = sld [smem:[#allocation3]]
    %v134 = vld [vmem:[#allocation10] sm:$0xff]
    %v135 = vld [vmem:[#allocation10 + $0x8] sm:$0xff]
    %v136 = vld [vmem:[#allocation10 + $0x10] sm:$0xff]
    %v137 = vld [vmem:[#allocation10 + $0x18] sm:$0xff]
    %v138 = vstv %s133
    %v139 = vmul.f32 %v138, %v134
    %v140 = vmul.f32 %v138, %v135
    %v141 = vmul.f32 %v138, %v136
    %v142 = vmul.f32 %v138, %v137
    %v143 = vadd.f32 %v129, %v139
    %v144 = vadd.f32 %v130, %v140
    %v145 = vadd.f32 %v131, %v141
    %v146 = vadd.f32 %v132, %v142
    %s147 = sld [smem:[#allocation3 + $0x1]]
    %s148 = scalar_lea.vmem [#allocation10], 32
    %v149 = vld [vmem:[%s148] sm:$0xff]
    %v150 = vld [vmem:[%s148 + $0x8] sm:$0xff]
    %v151 = vld [vmem:[%s148 + $0x10] sm:$0xff]
    %v152 = vld [vmem:[%s148 + $0x18] sm:$0xff]
    %v153 = vstv %s147
    %v154 = vmul.f32 %v153, %v149
    %v155 = vmul.f32 %v153, %v150
    %v156 = vmul.f32 %v153, %v151
    %v157 = vmul.f32 %v153, %v152
    %v158 = vadd.f32 %v143, %v154
    %v159 = vadd.f32 %v144, %v155
    %v160 = vadd.f32 %v145, %v156
    %v161 = vadd.f32 %v146, %v157
    %s162 = sld [smem:[#allocation3 + $0x2]]
    %s163 = scalar_lea.vmem [#allocation10], 64
    %v164 = vld [vmem:[%s163] sm:$0xff]
    %v165 = vld [vmem:[%s163 + $0x8] sm:$0xff]
    %v166 = vld [vmem:[%s163 + $0x10] sm:$0xff]
    %v167 = vld [vmem:[%s163 + $0x18] sm:$0xff]
    %v168 = vstv %s162
    %v169 = vmul.f32 %v168, %v164
    %v170 = vmul.f32 %v168, %v165
    %v171 = vmul.f32 %v168, %v166
    %v172 = vmul.f32 %v168, %v167
    %v173 = vadd.f32 %v158, %v169
    %v174 = vadd.f32 %v159, %v170
    %v175 = vadd.f32 %v160, %v171
    %v176 = vadd.f32 %v161, %v172
    %s177 = sld [smem:[#allocation3 + $0x3]]
    %s178 = scalar_lea.vmem [#allocation10], 96
    %v179 = vld [vmem:[%s178] sm:$0xff]
    %v180 = vld [vmem:[%s178 + $0x8] sm:$0xff]
    %v181 = vld [vmem:[%s178 + $0x10] sm:$0xff]
    %v182 = vld [vmem:[%s178 + $0x18] sm:$0xff]
    %v183 = vstv %s177
    %v184 = vmul.f32 %v183, %v179
    %v185 = vmul.f32 %v183, %v180
    %v186 = vmul.f32 %v183, %v181
    %v187 = vmul.f32 %v183, %v182
    %v188 = vadd.f32 %v173, %v184
    %v189 = vadd.f32 %v174, %v185
    %v190 = vadd.f32 %v175, %v186
    %v191 = vadd.f32 %v176, %v187
    %v192 = vld [vmem:[#allocation4] sm:$0xff]
    %v193 = vld [vmem:[%s6] sm:$0x1]
    %v195 = vperm.slane %v193, 0
    %vm197 = vcmask 261120
    %v199 = vsel %vm197, %v192, 0
    %201 = vmatpush.msra.mxu0 0.0
    %202 = vmatpush.msra.mxu0 0.0
    %203 = vmatpush.msra.mxu0 0.0
    %204 = vmatpush.msra.mxu0 0.0
    %205 = vmatpush.msra.mxu0 0.0
    %206 = vmatpush.msra.mxu0 0.0
    %207 = vmatpush.msra.mxu0 0.0
    %208 = vmatpush.msra.mxu0 0.0
    %209 = vmatpush.msra.mxu0 0.0
    %210 = vmatpush.msra.mxu0 0.0
    %211 = vmatpush.msra.mxu0 0.0
    %212 = vmatpush.msra.mxu0 0.0
    %213 = vmatpush.msra.mxu0 %v191
    %214 = vmatpush.msra.mxu0 %v190
    %215 = vmatpush.msra.mxu0 %v189
    %216 = vmatpush.msra.mxu0 %v188
    %217 = vmatmul.f32.gmra.mxu0 %v199
    %v218 = vpop.f32.mrf.mxu0
    %v219 = vadd.f32 %v195, %v218
    %220 = vdwg.mxu0
    %221 = vst [vmem:[#allocation12] sm:$0xff] %v219
    // Predicated region
    $region42: #{tpu_custom_call.1} parent=1 // pred_check
      _
    $region43: #{tpu_custom_call.1} parent=1 // pred_check_branch
      %223 = sbr.rel (0) target = $region45
    $region44: #{tpu_custom_call.1} parent=1 // pred_region
      %225 = vsyncadd [#allocation6], 0
      %s227 = sshll.u32 [#allocation12], 4
      %s228 = int_to_ptr.vmem [resolvable:$true] %s227
      %s229 = sshll.u32 %s7, 4
      %s230 = int_to_ptr.hbm [resolvable:$true] %s229
      %232 = dma.vmem_to_hbm [thread:$0]  %s228, 128, %s230, [#allocation6]
    $region45: #{tpu_custom_call.1} parent=1 // pred_fallthru
      _
    // Predicated region
    $region46: #{tpu_custom_call.1} parent=1 // pred_check
      _
    $region47: #{tpu_custom_call.1} parent=1 // pred_check_branch
      %234 = sbr.rel (0) target = $region49
    $region48: #{tpu_custom_call.1} parent=1 // pred_region
      %236 = dma.done [#allocation6], 128
    $region49: #{tpu_custom_call.1} parent=1 // pred_fallthru
      _
    %237 = vsyncpa [#allocation5], 1
    %238 = vsyncpa [#allocation8], 1
    %239 = vsyncpa [#allocation11], 1
    %240 = vsyncpa [#allocation6], 1

</llo_original>
